<compile_context>
chip_gen: v7x
topology: tpu7x:2x2x1
jax: 0.10.0
libtpu: 0.0.40
codegen_flags: <defaults>
</compile_context>

<pallas_src>
import functools

import jax
import jax.numpy as jnp
from jax.experimental import pallas as pl
from jax.experimental.pallas import tpu as pltpu


# Scoped VMEM limit: comfortably below v7x's 64 MiB physical VMEM while still
# well above the 16/32 MiB defaults on v5e/v6e.
_VMEM_LIMIT_BYTES = 48 * 1024 * 1024


def _mlp_kernel(x_ref, *refs):
    """Fused MLP forward for one batch tile, batch on the lane axis.

    x_ref : (input_dim, TB) VMEM tile of activations (one batch tile, transposed)
    refs  : (w0, b0, w1, b1, ..., wL, bL, out_ref)
            w_l : (out_l, in_l)  full-block weight (PyTorch layout, VMEM-resident)
            b_l : (out_l, 1)     full-block bias
            out_ref : (output_dim, TB) lane-dense output tile
    ReLU after every layer except the last (module defaults).
    """
    out_ref = refs[-1]
    params = refs[:-1]
    n_linear = len(params) // 2

    h = x_ref[...]                                     # (d_prev, TB), native dtype
    for l in range(n_linear):
        w = params[2 * l][...]                         # (d_out, d_prev), native dtype
        b = params[2 * l + 1][...]                     # (d_out, 1)
        # MXU matmul: M=d_out (small), K=d_prev, N=TB>=128 -> lanes are filled.
        acc = jnp.dot(w, h, preferred_element_type=jnp.float32)
        acc = acc + b.astype(jnp.float32)              # bias in f32 (VPU)
        if l < n_linear - 1:
            acc = jnp.maximum(acc, 0.0)                # nn.ReLU in f32
            # Feed the next MXU pass in the weights' native dtype (bf16-friendly).
            h = acc.astype(params[2 * (l + 1)].dtype)
        else:
            h = acc
    out_ref[...] = h.astype(out_ref.dtype)             # lane-dense store (TB wide)


def _pick_batch_tile(batch, dims, itemsize, vmem_budget_bytes):
    """Largest lane-aligned batch tile that fits the VMEM budget, while keeping
    enough grid steps for v7x's two TensorCores + pipeline overlap."""
    # Resident parameters are single-buffered (pl.Buffered(1)).
    param_bytes = sum(dims[l] * dims[l + 1] + dims[l + 1]
                      for l in range(len(dims) - 1)) * itemsize
    avail = max(vmem_budget_bytes - param_bytes, 4 << 20)
    # Per batch-column bytes: double-buffered x/out tiles + f32 acc + next-layer h.
    per_col = 2 * (dims[0] + dims[-1]) * itemsize + 8 * max(dims)
    min_steps = min(8, pl.cdiv(batch, 128))            # keep both v7x cores fed
    for tb in (1024, 512, 256):
        if tb * per_col <= avail and pl.cdiv(batch, tb) >= min_steps:
            return tb
    return 128


@functools.partial(jax.jit, static_argnames=("vmem_budget_bytes",))
def mlp_forward(x, weights, biases, *, vmem_budget_bytes=40 * 1024 * 1024):
    """x: (B, input_dim). weights[l]: (out_l, in_l)  (PyTorch nn.Linear layout).
    biases[l]: (out_l,).  Returns (B, output_dim)."""
    B, d_in = x.shape
    assert weights[0].shape[1] == d_in
    dims = [d_in] + [w.shape[0] for w in weights]
    out_dim = dims[-1]

    tb = _pick_batch_tile(B, dims, x.dtype.itemsize, vmem_budget_bytes)
    grid = (pl.cdiv(B, tb),)        # ragged last tile handled by Pallas masking

    # Put the batch on the lane axis: one-time layout plumbing in the wrapper so
    # every in-kernel load/store is lane-dense and the MXU N dimension is TB.
    xt = x.T                                            # (d_in, B)

    const = lambda i: (0, 0)
    in_specs = [pl.BlockSpec((d_in, tb), lambda i: (0, i))]
    args = [xt]
    for w, b in zip(weights, biases):
        # Full-block, constant index_map, single-buffered: DMA'd to VMEM once,
        # resident for the whole grid, no wasted double-buffer VMEM.
        in_specs.append(pl.BlockSpec(w.shape, const, pipeline_mode=pl.Buffered(1)))
        in_specs.append(pl.BlockSpec((w.shape[0], 1), const,
                                     pipeline_mode=pl.Buffered(1)))
        args.append(w)
        args.append(b.reshape(-1, 1))

    out_t = pl.pallas_call(
        _mlp_kernel,
        out_shape=jax.ShapeDtypeStruct((out_dim, B), x.dtype),
        grid=grid,
        in_specs=in_specs,
        out_specs=pl.BlockSpec((out_dim, tb), lambda i: (0, i)),
        compiler_params=pltpu.CompilerParams(
            # Batch tiles are independent -> megacore-shardable on v7x.
            dimension_semantics=("parallel",),
            vmem_limit_bytes=_VMEM_LIMIT_BYTES),
    )(*args)
    return out_t.T                                      # (B, output_dim)


def _mlp_ref(x, weights, biases):
    """Plain-JAX reference matching the PyTorch nn.Sequential semantics."""
    h = x.astype(jnp.float32)
    for l, (w, b) in enumerate(zip(weights, biases)):
        h = h @ w.astype(jnp.float32).T + b.astype(jnp.float32)
        if l < len(weights) - 1:
            h = jnp.maximum(h, 0.0)
    return h


def _make_params(key, input_dim, hidden_dim, output_dim, n_layers,
                 dtype=jnp.float32):
    """Deterministic MLP parameters in PyTorch nn.Linear layout (out, in)."""
    dims = [input_dim] + [hidden_dim] * n_layers + [output_dim]
    weights, biases = [], []
    for l in range(len(dims) - 1):
        key, kw, kb = jax.random.split(key, 3)
        scale = 1.0 / jnp.sqrt(jnp.float32(dims[l]))
        weights.append(
            (jax.random.normal(kw, (dims[l + 1], dims[l]), jnp.float32) * scale
             ).astype(dtype))
        biases.append(
            (jax.random.normal(kb, (dims[l + 1],), jnp.float32) * scale
             ).astype(dtype))
    return weights, biases


if __name__ == "__main__":
    key = jax.random.PRNGKey(0)
    input_dim, hidden_dim, output_dim, n_layers = 16, 32, 8, 2

    kp, kx1, kx2 = jax.random.split(key, 3)
    weights, biases = _make_params(kp, input_dim, hidden_dim, output_dim, n_layers)

    # Small primary case (batch=2): single grid step, ragged (masked) tile.
    x_small = jax.random.normal(kx1, (2, input_dim), jnp.float32)
    y_small = mlp_forward(x_small, weights, biases)
    jax.block_until_ready(y_small)
    ref_small = _mlp_ref(x_small, weights, biases)
    assert y_small.shape == (2, output_dim)
    assert jnp.allclose(y_small, ref_small, rtol=1e-5, atol=1e-5)

    # Larger batch: multi-step grid + ragged last tile, no jnp.pad copy.
    x_big = jax.random.normal(kx2, (200, input_dim), jnp.float32)
    y_big = mlp_forward(x_big, weights, biases)
    jax.block_until_ready(y_big)
    ref_big = _mlp_ref(x_big, weights, biases)
    assert y_big.shape == (200, output_dim)
    assert jnp.allclose(y_big, ref_big, rtol=1e-5, atol=1e-5)

    print("KERNEL_OK")
</pallas_src>

<mosaic_0001>
module attributes {stable_mosaic.version = 11 : i64} {
  func.func @_mlp_kernel(%arg0: i32, %arg1: memref<16x1024xf32, #tpu.memory_space<vmem>>, %arg2: memref<32x16xf32, #tpu.memory_space<vmem>>, %arg3: memref<32x1xf32, #tpu.memory_space<vmem>>, %arg4: memref<32x32xf32, #tpu.memory_space<vmem>>, %arg5: memref<32x1xf32, #tpu.memory_space<vmem>>, %arg6: memref<8x32xf32, #tpu.memory_space<vmem>>, %arg7: memref<8x1xf32, #tpu.memory_space<vmem>>, %arg8: memref<8x1024xf32, #tpu.memory_space<vmem>>) attributes {dimension_semantics = [#tpu.dimension_semantics<parallel>], iteration_bounds = array<i64: 1>, scalar_prefetch = 0 : i64, scratch_operands = 0 : i64, tpu.core_type = #tpu.core_type<tc>, window_params = [{transform_indices = @transform_0, window_bounds = array<i64: 16, 1024>}, {pipeline_mode = #tpu.pipeline_mode<synchronous>, transform_indices = @transform_1, window_bounds = array<i64: 32, 16>}, {pipeline_mode = #tpu.pipeline_mode<synchronous>, transform_indices = @transform_2, window_bounds = array<i64: 32, 1>}, {pipeline_mode = #tpu.pipeline_mode<synchronous>, transform_indices = @transform_3, window_bounds = array<i64: 32, 32>}, {pipeline_mode = #tpu.pipeline_mode<synchronous>, transform_indices = @transform_4, window_bounds = array<i64: 32, 1>}, {pipeline_mode = #tpu.pipeline_mode<synchronous>, transform_indices = @transform_5, window_bounds = array<i64: 8, 32>}, {pipeline_mode = #tpu.pipeline_mode<synchronous>, transform_indices = @transform_6, window_bounds = array<i64: 8, 1>}, {transform_indices = @transform_7, window_bounds = array<i64: 8, 1024>}]} {
    %c0 = arith.constant 0 : index
    %c0_0 = arith.constant 0 : index
    %0 = vector.load %arg1[%c0, %c0_0] : memref<16x1024xf32, #tpu.memory_space<vmem>>, vector<16x1024xf32>
    %c0_1 = arith.constant 0 : index
    %c0_2 = arith.constant 0 : index
    %1 = vector.load %arg2[%c0_1, %c0_2] : memref<32x16xf32, #tpu.memory_space<vmem>>, vector<32x16xf32>
    %c0_3 = arith.constant 0 : index
    %c0_4 = arith.constant 0 : index
    %2 = vector.load %arg3[%c0_3, %c0_4] : memref<32x1xf32, #tpu.memory_space<vmem>>, vector<32x1xf32>
    %cst = arith.constant dense<0.000000e+00> : vector<32x1024xf32>
    %3 = tpu.matmul %1, %0, %cst {dimension_numbers = #tpu.dot_dimension_numbers<[1], [0], [0], [1], [0, 0, 1, 1], [], []>} : vector<32x16xf32>, vector<16x1024xf32>, vector<32x1024xf32> -> vector<32x1024xf32>
    %4 = vector.broadcast %2 : vector<32x1xf32> to vector<32x1024xf32>
    %5 = arith.addf %3, %4 : vector<32x1024xf32>
    %cst_5 = arith.constant 0.000000e+00 : f32
    %6 = vector.broadcast %cst_5 : f32 to vector<32x1024xf32>
    %7 = arith.maximumf %5, %6 : vector<32x1024xf32>
    %c0_6 = arith.constant 0 : index
    %c0_7 = arith.constant 0 : index
    %8 = vector.load %arg4[%c0_6, %c0_7] : memref<32x32xf32, #tpu.memory_space<vmem>>, vector<32x32xf32>
    %c0_8 = arith.constant 0 : index
    %c0_9 = arith.constant 0 : index
    %9 = vector.load %arg5[%c0_8, %c0_9] : memref<32x1xf32, #tpu.memory_space<vmem>>, vector<32x1xf32>
    %cst_10 = arith.constant dense<0.000000e+00> : vector<32x1024xf32>
    %10 = tpu.matmul %8, %7, %cst_10 {dimension_numbers = #tpu.dot_dimension_numbers<[1], [0], [0], [1], [0, 0, 1, 1], [], []>} : vector<32x32xf32>, vector<32x1024xf32>, vector<32x1024xf32> -> vector<32x1024xf32>
    %11 = vector.broadcast %9 : vector<32x1xf32> to vector<32x1024xf32>
    %12 = arith.addf %10, %11 : vector<32x1024xf32>
    %cst_11 = arith.constant 0.000000e+00 : f32
    %13 = vector.broadcast %cst_11 : f32 to vector<32x1024xf32>
    %14 = arith.maximumf %12, %13 : vector<32x1024xf32>
    %c0_12 = arith.constant 0 : index
    %c0_13 = arith.constant 0 : index
    %15 = vector.load %arg6[%c0_12, %c0_13] : memref<8x32xf32, #tpu.memory_space<vmem>>, vector<8x32xf32>
    %c0_14 = arith.constant 0 : index
    %c0_15 = arith.constant 0 : index
    %16 = vector.load %arg7[%c0_14, %c0_15] : memref<8x1xf32, #tpu.memory_space<vmem>>, vector<8x1xf32>
    %cst_16 = arith.constant dense<0.000000e+00> : vector<8x1024xf32>
    %17 = tpu.matmul %15, %14, %cst_16 {dimension_numbers = #tpu.dot_dimension_numbers<[1], [0], [0], [1], [0, 0, 1, 1], [], []>} : vector<8x32xf32>, vector<32x1024xf32>, vector<8x1024xf32> -> vector<8x1024xf32>
    %18 = vector.broadcast %16 : vector<8x1xf32> to vector<8x1024xf32>
    %19 = arith.addf %17, %18 : vector<8x1024xf32>
    %c0_17 = arith.constant 0 : index
    %c0_18 = arith.constant 0 : index
    %20 = vector.load %arg8[%c0_17, %c0_18] : memref<8x1024xf32, #tpu.memory_space<vmem>>, vector<8x1024xf32>
    tpu.vector_store %arg8[%c0_17, %c0_18], %19 {strides = array<i32>} : memref<8x1024xf32, #tpu.memory_space<vmem>>, vector<8x1024xf32>,
    return
  }
  func.func @transform_0(%arg0: i32) -> (i32, i32) {
    %c0_i32 = arith.constant 0 : i32
    %c0_i32_0 = arith.constant 0 : i32
    return %c0_i32, %arg0 : i32, i32
  }
  func.func @transform_1(%arg0: i32) -> (i32, i32) {
    %c0_i32 = arith.constant 0 : i32
    %c0_i32_0 = arith.constant 0 : i32
    %c0_i32_1 = arith.constant 0 : i32
    return %c0_i32, %c0_i32_0 : i32, i32
  }
  func.func @transform_2(%arg0: i32) -> (i32, i32) {
    %c0_i32 = arith.constant 0 : i32
    %c0_i32_0 = arith.constant 0 : i32
    %c0_i32_1 = arith.constant 0 : i32
    return %c0_i32, %c0_i32_0 : i32, i32
  }
  func.func @transform_3(%arg0: i32) -> (i32, i32) {
    %c0_i32 = arith.constant 0 : i32
    %c0_i32_0 = arith.constant 0 : i32
    %c0_i32_1 = arith.constant 0 : i32
    return %c0_i32, %c0_i32_0 : i32, i32
  }
  func.func @transform_4(%arg0: i32) -> (i32, i32) {
    %c0_i32 = arith.constant 0 : i32
    %c0_i32_0 = arith.constant 0 : i32
    %c0_i32_1 = arith.constant 0 : i32
    return %c0_i32, %c0_i32_0 : i32, i32
  }
  func.func @transform_5(%arg0: i32) -> (i32, i32) {
    %c0_i32 = arith.constant 0 : i32
    %c0_i32_0 = arith.constant 0 : i32
    %c0_i32_1 = arith.constant 0 : i32
    return %c0_i32, %c0_i32_0 : i32, i32
  }
  func.func @transform_6(%arg0: i32) -> (i32, i32) {
    %c0_i32 = arith.constant 0 : i32
    %c0_i32_0 = arith.constant 0 : i32
    %c0_i32_1 = arith.constant 0 : i32
    return %c0_i32, %c0_i32_0 : i32, i32
  }
  func.func @transform_7(%arg0: i32) -> (i32, i32) {
    %c0_i32 = arith.constant 0 : i32
    %c0_i32_0 = arith.constant 0 : i32
    return %c0_i32, %arg0 : i32, i32
  }
}

</mosaic_0001>

<llo_original>
// kernel: mlp_forward.1
$region0: #{mlp_forward.1}
  #allocation0 [shape = 'u32[]', space=smem, size = 0x4, offset = 0x4, fixed_abs, tag = 'smem constant byte address 0x4 - core index']
  #allocation1 [shape = 'u32[144,128]{1,0:T(1,128)}', space=vmem, size = 0x12000, scoped, tag = 'internal scratch']
  %s0 = inlined_call_operand.vmem [shape: f32[16,2], index: 0, kind: input, shape index: {}]
  %s1 = inlined_call_operand.vmem [shape: f32[32,16], index: 1, kind: input, shape index: {}]
  %s2 = inlined_call_operand.vmem [shape: f32[32,1], index: 2, kind: input, shape index: {}]
  %s3 = inlined_call_operand.vmem [shape: f32[32,32], index: 3, kind: input, shape index: {}]
  %s4 = inlined_call_operand.vmem [shape: f32[32,1], index: 4, kind: input, shape index: {}]
  %s5 = inlined_call_operand.vmem [shape: f32[8,32], index: 5, kind: input, shape index: {}]
  %s6 = inlined_call_operand.vmem [shape: f32[8,1], index: 6, kind: input, shape index: {}]
  %s7 = inlined_call_operand.vmem [shape: f32[8,2], index: 7, kind: output, shape index: {}]
  %s8 = sld [smem:[#allocation0]]
  $region110: #{mlp_forward.1} parent=0
    _
  %s10 = ssub.s32 1, %s8
  %s11 = scalar_select 0, %s10, %s8
  $region1: #{mlp_forward.1} parent=0
    #allocation2 [shape = 'u8[65536]{0}', space=vmem, size = 0x10000, scoped, tag = 'input window, operand 0, single buffered']
    #allocation3 [shape = 'u8[32768]{0}', space=vmem, size = 0x8000, scoped, tag = 'output window, operand 0, single buffered']
    // Predicated region
    $region2: #{mlp_forward.1} parent=1 // pred_check
      _
    $region3: #{mlp_forward.1} parent=1 // pred_check_branch
      %13 = sbr.rel (0) target = $region5
    $region4: #{mlp_forward.1} parent=1 // pred_region
      // Predicated region
      $region6: #{mlp_forward.1} parent=4 // pred_check
        _
      $region7: #{mlp_forward.1} parent=4 // pred_check_branch
        %15 = sbr.rel (0) target = $region9
      $region8: #{mlp_forward.1} parent=4 // pred_region
        // Predicated region
        $region10: #{mlp_forward.1} parent=8 // pred_check
          _
        $region11: #{mlp_forward.1} parent=8 // pred_check_branch
          %17 = sbr.rel (0) target = $region13
        $region12: #{mlp_forward.1} parent=8 // pred_region
          // Predicated region
          $region25: #{mlp_forward.1} parent=12 // pred_check
            _
          $region26: #{mlp_forward.1} parent=12 // pred_check_branch
            %34 = sbr.rel (0) target = $region28
          $region27: #{mlp_forward.1} parent=12 // pred_region
            loop: start=0, step=1, limit=1
            $region29: #{mlp_forward.1} parent=27 // loop_pre_header
              _
            $region30: #{mlp_forward.1} parent=27 // loop_header
              %s36 = sphi 0, %s40
              %p37 = scmp.ge.s32.totalorder %s36, 1
              %s41 = sphi %s0, %s0
              %s42 = sphi [#allocation2], [#allocation2]
            $region31: #{mlp_forward.1} parent=27 // loop_header_branch
              %39 = sbr.rel (%p37) target = $region35
            $region32: #{mlp_forward.1} parent=27 // loop_body
              %v43 = vld [vmem:[%s41] sm:$0xff]
              %44 = vst [vmem:[%s42] sm:$0xff] %v43
              %v45 = vld [vmem:[%s41 + $0x8] sm:$0xff]
              %46 = vst [vmem:[%s42 + $0x40] sm:$0xff] %v45
            $region33: #{mlp_forward.1} parent=27 // loop_footer
              %s40 = sadd.s32 1, %s36
            $region34: #{mlp_forward.1} parent=27 // loop_footer_branch
              %35 = sbr.rel target = $region30
            $region35: #{mlp_forward.1} parent=27 // loop_exit
              _
          $region28: #{mlp_forward.1} parent=12 // pred_fallthru
            _
          // Predicated region
          $region36: #{mlp_forward.1} parent=12 // pred_check
            _
          $region37: #{mlp_forward.1} parent=12 // pred_check_branch
            %48 = sbr.rel target = $region39
          $region38: #{mlp_forward.1} parent=12 // pred_region
            _
          $region39: #{mlp_forward.1} parent=12 // pred_fallthru
            _
        $region13: #{mlp_forward.1} parent=8 // pred_fallthru
          _
        // Predicated region
        $region14: #{mlp_forward.1} parent=8 // pred_check
          _
        $region15: #{mlp_forward.1} parent=8 // pred_check_branch
          %19 = sbr.rel target = $region17
        $region16: #{mlp_forward.1} parent=8 // pred_region
          loop: start=0, step=1, limit=1
          $region18: #{mlp_forward.1} parent=16 // loop_pre_header
            _
          $region19: #{mlp_forward.1} parent=16 // loop_header
            %s22 = sphi 0, %s26
            %p23 = scmp.ge.s32.totalorder %s22, 1
            %s27 = sphi %s0, %s0
            %s28 = sphi [#allocation2], [#allocation2]
          $region20: #{mlp_forward.1} parent=16 // loop_header_branch
            %25 = sbr.rel (%p23) target = $region24
          $region21: #{mlp_forward.1} parent=16 // loop_body
            %v29 = vld [vmem:[%s27] sm:$0xff]
            %30 = vst [vmem:[%s28] sm:$0xff] %v29
            %v31 = vld [vmem:[%s27 + $0x8] sm:$0xff]
            %32 = vst [vmem:[%s28 + $0x40] sm:$0xff] %v31
          $region22: #{mlp_forward.1} parent=16 // loop_footer
            %s26 = sadd.s32 1, %s22
          $region23: #{mlp_forward.1} parent=16 // loop_footer_branch
            %21 = sbr.rel target = $region19
          $region24: #{mlp_forward.1} parent=16 // loop_exit
            _
        $region17: #{mlp_forward.1} parent=8 // pred_fallthru
          _
      $region9: #{mlp_forward.1} parent=4 // pred_fallthru
        _
      %49 = vnop
    $region5: #{mlp_forward.1} parent=1 // pred_fallthru
      _
    // Predicated region
    $region40: #{mlp_forward.1} parent=1 // pred_check
      _
    $region41: #{mlp_forward.1} parent=1 // pred_check_branch
      %51 = sbr.rel (0) target = $region43
    $region42: #{mlp_forward.1} parent=1 // pred_region
      _
    $region43: #{mlp_forward.1} parent=1 // pred_fallthru
      _
    // Predicated region
    $region44: #{mlp_forward.1} parent=1 // pred_check
      _
    $region45: #{mlp_forward.1} parent=1 // pred_check_branch
      %53 = sbr.rel (0) target = $region47
    $region46: #{mlp_forward.1} parent=1 // pred_region
      _
    $region47: #{mlp_forward.1} parent=1 // pred_fallthru
      _
    // Predicated region
    $region48: #{mlp_forward.1} parent=1 // pred_check
      _
    $region49: #{mlp_forward.1} parent=1 // pred_check_branch
      %55 = sbr.rel (0) target = $region51
    $region50: #{mlp_forward.1} parent=1 // pred_region
      _
    $region51: #{mlp_forward.1} parent=1 // pred_fallthru
      _
    // Predicated region
    $region52: #{mlp_forward.1} parent=1 // pred_check
      _
    $region53: #{mlp_forward.1} parent=1 // pred_check_branch
      %57 = sbr.rel (0) target = $region55
    $region54: #{mlp_forward.1} parent=1 // pred_region
      _
    $region55: #{mlp_forward.1} parent=1 // pred_fallthru
      _
    // Predicated region
    $region56: #{mlp_forward.1} parent=1 // pred_check
      _
    $region57: #{mlp_forward.1} parent=1 // pred_check_branch
      %59 = sbr.rel (0) target = $region59
    $region58: #{mlp_forward.1} parent=1 // pred_region
      _
    $region59: #{mlp_forward.1} parent=1 // pred_fallthru
      _
    // Predicated region
    $region60: #{mlp_forward.1} parent=1 // pred_check
      _
    $region61: #{mlp_forward.1} parent=1 // pred_check_branch
      %61 = sbr.rel (0) target = $region63
    $region62: #{mlp_forward.1} parent=1 // pred_region
      _
    $region63: #{mlp_forward.1} parent=1 // pred_fallthru
      _
    // Predicated region
    $region64: #{mlp_forward.1} parent=1 // pred_check
      _
    $region65: #{mlp_forward.1} parent=1 // pred_check_branch
      %63 = sbr.rel (0) target = $region67
    $region66: #{mlp_forward.1} parent=1 // pred_region
      _
    $region67: #{mlp_forward.1} parent=1 // pred_fallthru
      _
    %v64 = vld [vmem:[#allocation2] sm:$0xff]
    %v65 = vld [vmem:[#allocation2 + $0x8] sm:$0xff]
    %v66 = vld [vmem:[#allocation2 + $0x10] sm:$0xff]
    %v67 = vld [vmem:[#allocation2 + $0x18] sm:$0xff]
    %v68 = vld [vmem:[#allocation2 + $0x20] sm:$0xff]
    %v69 = vld [vmem:[#allocation2 + $0x28] sm:$0xff]
    %v70 = vld [vmem:[#allocation2 + $0x30] sm:$0xff]
    %v71 = vld [vmem:[#allocation2 + $0x38] sm:$0xff]
    %v72 = vld [vmem:[#allocation2 + $0x40] sm:$0xff]
    %v73 = vld [vmem:[#allocation2 + $0x48] sm:$0xff]
    %v74 = vld [vmem:[#allocation2 + $0x50] sm:$0xff]
    %v75 = vld [vmem:[#allocation2 + $0x58] sm:$0xff]
    %v76 = vld [vmem:[#allocation2 + $0x60] sm:$0xff]
    %v77 = vld [vmem:[#allocation2 + $0x68] sm:$0xff]
    %v78 = vld [vmem:[#allocation2 + $0x70] sm:$0xff]
    %v79 = vld [vmem:[#allocation2 + $0x78] sm:$0xff]
    %v80 = vld [vmem:[%s1] sm:$0xff]
    %v81 = vld [vmem:[%s1 + $0x8] sm:$0xff]
    %v82 = vld [vmem:[%s1 + $0x10] sm:$0xff]
    %v83 = vld [vmem:[%s1 + $0x18] sm:$0xff]
    %v84 = vld [vmem:[%s2] sm:$0xff]
    %v85 = vld [vmem:[%s2 + $0x8] sm:$0xff]
    %v86 = vld [vmem:[%s2 + $0x10] sm:$0xff]
    %v87 = vld [vmem:[%s2 + $0x18] sm:$0xff]
    %89 = vset.pattern.permute.xlu0 0
    %90 = vperm.xlu0 %89, %v84
    %v91 = vpop.permute.xlu0 %90
    %94 = vset.pattern.permute.xlu0 0
    %95 = vperm.xlu0 %94, %v85
    %v96 = vpop.permute.xlu0 %95
    %99 = vset.pattern.permute.xlu0 0
    %100 = vperm.xlu0 %99, %v86
    %v101 = vpop.permute.xlu0 %100
    %104 = vset.pattern.permute.xlu0 0
    %105 = vperm.xlu0 %104, %v87
    %v106 = vpop.permute.xlu0 %105
    %vm108 = vcmask 130048
    %v110 = vsel %vm108, %v80, 0
    %v113 = vsel %vm108, %v81, 0
    %v116 = vsel %vm108, %v82, 0
    %v119 = vsel %vm108, %v83, 0
    %121 = vmatprep.subr.mxu0 %v65
    %122 = vmatpush1.msra.mxu0 %v64
    %123 = vmatprep.subr.mxu0 %v73
    %124 = vmatpush1.msra.mxu0 %v72
    %125 = vmatprep.subr.mxu0 0.0
    %126 = vmatpush1.msra.mxu0 0.0
    %127 = vmatprep.subr.mxu0 0.0
    %128 = vmatpush1.msra.mxu0 0.0
    %129 = vmatprep.subr.mxu0 0.0
    %130 = vmatpush1.msra.mxu0 0.0
    %131 = vmatprep.subr.mxu0 0.0
    %132 = vmatpush1.msra.mxu0 0.0
    %133 = vmatprep.subr.mxu0 0.0
    %134 = vmatpush1.msra.mxu0 0.0
    %135 = vmatprep.subr.mxu0 0.0
    %136 = vmatpush1.msra.mxu0 0.0
    %137 = vmatprep.subr.mxu0 0.0
    %138 = vmatpush1.msra.mxu0 0.0
    %139 = vmatprep.subr.mxu0 0.0
    %140 = vmatpush1.msra.mxu0 0.0
    %141 = vmatprep.subr.mxu0 0.0
    %142 = vmatpush1.msra.mxu0 0.0
    %143 = vmatprep.subr.mxu0 0.0
    %144 = vmatpush1.msra.mxu0 0.0
    %145 = vmatprep.subr.mxu0 0.0
    %146 = vmatpush1.msra.mxu0 0.0
    %147 = vmatprep.subr.mxu0 0.0
    %148 = vmatpush1.msra.mxu0 0.0
    %149 = vmatprep.subr.mxu0 0.0
    %150 = vmatpush1.msra.mxu0 0.0
    %151 = vmatprep.subr.mxu0 0.0
    %152 = vmatpush1.msra.mxu0 0.0
    %153 = vmatprep.subr.mxu0 0.0
    %154 = vmatpush1.msra.mxu0 0.0
    %155 = vmatprep.subr.mxu0 0.0
    %156 = vmatpush1.msra.mxu0 0.0
    %157 = vmatprep.subr.mxu0 0.0
    %158 = vmatpush1.msra.mxu0 0.0
    %159 = vmatprep.subr.mxu0 0.0
    %160 = vmatpush1.msra.mxu0 0.0
    %161 = vmatprep.subr.mxu0 0.0
    %162 = vmatpush1.msra.mxu0 0.0
    %163 = vmatprep.subr.mxu0 0.0
    %164 = vmatpush1.msra.mxu0 0.0
    %165 = vmatprep.subr.mxu0 0.0
    %166 = vmatpush1.msra.mxu0 0.0
    %167 = vmatprep.subr.mxu0 0.0
    %168 = vmatpush1.msra.mxu0 0.0
    %169 = vmatprep.subr.mxu0 0.0
    %170 = vmatpush1.msra.mxu0 0.0
    %171 = vmatprep.subr.mxu0 0.0
    %172 = vmatpush1.msra.mxu0 0.0
    %173 = vmatprep.subr.mxu0 0.0
    %174 = vmatpush1.msra.mxu0 0.0
    %175 = vmatprep.subr.mxu0 0.0
    %176 = vmatpush1.msra.mxu0 0.0
    %177 = vmatprep.subr.mxu0 0.0
    %178 = vmatpush1.msra.mxu0 0.0
    %179 = vmatprep.subr.mxu0 0.0
    %180 = vmatpush1.msra.mxu0 0.0
    %181 = vmatprep.subr.mxu0 0.0
    %182 = vmatpush1.msra.mxu0 0.0
    %183 = vmatprep.subr.mxu0 0.0
    %184 = vmatpush1.msra.mxu0 0.0
    %185 = vmatprep.mubr.f32.mxu0 0.0
    %186 = vmatmul.mubr.f32.gmra.mrb[0].mxu0 %v110
    %v187 = vpop.f32.mrb[0].mxu0
    %v188 = vadd.f32 %v91, %v187
    %v189 = vpop.f32.mrb[0].mxu0
    %v190 = vadd.f32 %v91, %v189
    %191 = vmatprep.mubr.f32.mxu0 0.0
    %192 = vmatmul.mubr.f32.gmra.mrb[0].mxu0 %v113
    %v193 = vpop.f32.mrb[0].mxu0
    %v194 = vadd.f32 %v96, %v193
    %v195 = vpop.f32.mrb[0].mxu0
    %v196 = vadd.f32 %v96, %v195
    %197 = vmatprep.mubr.f32.mxu0 0.0
    %198 = vmatmul.mubr.f32.gmra.mrb[0].mxu0 %v116
    %v199 = vpop.f32.mrb[0].mxu0
    %v200 = vadd.f32 %v101, %v199
    %v201 = vpop.f32.mrb[0].mxu0
    %v202 = vadd.f32 %v101, %v201
    %203 = vmatprep.mubr.f32.mxu0 0.0
    %204 = vmatmul.mubr.f32.gmra.mrb[0].mxu0 %v119
    %v205 = vpop.f32.mrb[0].mxu0
    %v206 = vadd.f32 %v106, %v205
    %v207 = vpop.f32.mrb[0].mxu0
    %v208 = vadd.f32 %v106, %v207
    %209 = vdwg.mxu0
    %210 = vmatprep.subr.mxu0 %v67
    %211 = vmatpush1.msra.mxu0 %v66
    %212 = vmatprep.subr.mxu0 %v75
    %213 = vmatpush1.msra.mxu0 %v74
    %214 = vmatprep.subr.mxu0 0.0
    %215 = vmatpush1.msra.mxu0 0.0
    %216 = vmatprep.subr.mxu0 0.0
    %217 = vmatpush1.msra.mxu0 0.0
    %218 = vmatprep.subr.mxu0 0.0
    %219 = vmatpush1.msra.mxu0 0.0
    %220 = vmatprep.subr.mxu0 0.0
    %221 = vmatpush1.msra.mxu0 0.0
    %222 = vmatprep.subr.mxu0 0.0
    %223 = vmatpush1.msra.mxu0 0.0
    %224 = vmatprep.subr.mxu0 0.0
    %225 = vmatpush1.msra.mxu0 0.0
    %226 = vmatprep.subr.mxu0 0.0
    %227 = vmatpush1.msra.mxu0 0.0
    %228 = vmatprep.subr.mxu0 0.0
    %229 = vmatpush1.msra.mxu0 0.0
    %230 = vmatprep.subr.mxu0 0.0
    %231 = vmatpush1.msra.mxu0 0.0
    %232 = vmatprep.subr.mxu0 0.0
    %233 = vmatpush1.msra.mxu0 0.0
    %234 = vmatprep.subr.mxu0 0.0
    %235 = vmatpush1.msra.mxu0 0.0
    %236 = vmatprep.subr.mxu0 0.0
    %237 = vmatpush1.msra.mxu0 0.0
    %238 = vmatprep.subr.mxu0 0.0
    %239 = vmatpush1.msra.mxu0 0.0
    %240 = vmatprep.subr.mxu0 0.0
    %241 = vmatpush1.msra.mxu0 0.0
    %242 = vmatprep.subr.mxu0 0.0
    %243 = vmatpush1.msra.mxu0 0.0
    %244 = vmatprep.subr.mxu0 0.0
    %245 = vmatpush1.msra.mxu0 0.0
    %246 = vmatprep.subr.mxu0 0.0
    %247 = vmatpush1.msra.mxu0 0.0
    %248 = vmatprep.subr.mxu0 0.0
    %249 = vmatpush1.msra.mxu0 0.0
    %250 = vmatprep.subr.mxu0 0.0
    %251 = vmatpush1.msra.mxu0 0.0
    %252 = vmatprep.subr.mxu0 0.0
    %253 = vmatpush1.msra.mxu0 0.0
    %254 = vmatprep.subr.mxu0 0.0
    %255 = vmatpush1.msra.mxu0 0.0
    %256 = vmatprep.subr.mxu0 0.0
    %257 = vmatpush1.msra.mxu0 0.0
    %258 = vmatprep.subr.mxu0 0.0
    %259 = vmatpush1.msra.mxu0 0.0
    %260 = vmatprep.subr.mxu0 0.0
    %261 = vmatpush1.msra.mxu0 0.0
    %262 = vmatprep.subr.mxu0 0.0
    %263 = vmatpush1.msra.mxu0 0.0
    %264 = vmatprep.subr.mxu0 0.0
    %265 = vmatpush1.msra.mxu0 0.0
    %266 = vmatprep.subr.mxu0 0.0
    %267 = vmatpush1.msra.mxu0 0.0
    %268 = vmatprep.subr.mxu0 0.0
    %269 = vmatpush1.msra.mxu0 0.0
    %270 = vmatprep.subr.mxu0 0.0
    %271 = vmatpush1.msra.mxu0 0.0
    %272 = vmatprep.subr.mxu0 0.0
    %273 = vmatpush1.msra.mxu0 0.0
    %274 = vmatprep.mubr.f32.mxu0 0.0
    %275 = vmatmul.mubr.f32.gmra.mrb[0].mxu0 %v110
    %v276 = vpop.f32.mrb[0].mxu0
    %v277 = vadd.f32 %v91, %v276
    %v278 = vpop.f32.mrb[0].mxu0
    %v279 = vadd.f32 %v91, %v278
    %280 = vmatprep.mubr.f32.mxu0 0.0
    %281 = vmatmul.mubr.f32.gmra.mrb[0].mxu0 %v113
    %v282 = vpop.f32.mrb[0].mxu0
    %v283 = vadd.f32 %v96, %v282
    %v284 = vpop.f32.mrb[0].mxu0
    %v285 = vadd.f32 %v96, %v284
    %286 = vmatprep.mubr.f32.mxu0 0.0
    %287 = vmatmul.mubr.f32.gmra.mrb[0].mxu0 %v116
    %v288 = vpop.f32.mrb[0].mxu0
    %v289 = vadd.f32 %v101, %v288
    %v290 = vpop.f32.mrb[0].mxu0
    %v291 = vadd.f32 %v101, %v290
    %292 = vmatprep.mubr.f32.mxu0 0.0
    %293 = vmatmul.mubr.f32.gmra.mrb[0].mxu0 %v119
    %v294 = vpop.f32.mrb[0].mxu0
    %v295 = vadd.f32 %v106, %v294
    %v296 = vpop.f32.mrb[0].mxu0
    %v297 = vadd.f32 %v106, %v296
    %298 = vdwg.mxu0
    %299 = vmatprep.subr.mxu0 %v69
    %300 = vmatpush1.msra.mxu0 %v68
    %301 = vmatprep.subr.mxu0 %v77
    %302 = vmatpush1.msra.mxu0 %v76
    %303 = vmatprep.subr.mxu0 0.0
    %304 = vmatpush1.msra.mxu0 0.0
    %305 = vmatprep.subr.mxu0 0.0
    %306 = vmatpush1.msra.mxu0 0.0
    %307 = vmatprep.subr.mxu0 0.0
    %308 = vmatpush1.msra.mxu0 0.0
    %309 = vmatprep.subr.mxu0 0.0
    %310 = vmatpush1.msra.mxu0 0.0
    %311 = vmatprep.subr.mxu0 0.0
    %312 = vmatpush1.msra.mxu0 0.0
    %313 = vmatprep.subr.mxu0 0.0
    %314 = vmatpush1.msra.mxu0 0.0
    %315 = vmatprep.subr.mxu0 0.0
    %316 = vmatpush1.msra.mxu0 0.0
    %317 = vmatprep.subr.mxu0 0.0
    %318 = vmatpush1.msra.mxu0 0.0
    %319 = vmatprep.subr.mxu0 0.0
    %320 = vmatpush1.msra.mxu0 0.0
    %321 = vmatprep.subr.mxu0 0.0
    %322 = vmatpush1.msra.mxu0 0.0
    %323 = vmatprep.subr.mxu0 0.0
    %324 = vmatpush1.msra.mxu0 0.0
    %325 = vmatprep.subr.mxu0 0.0
    %326 = vmatpush1.msra.mxu0 0.0
    %327 = vmatprep.subr.mxu0 0.0
    %328 = vmatpush1.msra.mxu0 0.0
    %329 = vmatprep.subr.mxu0 0.0
    %330 = vmatpush1.msra.mxu0 0.0
    %331 = vmatprep.subr.mxu0 0.0
    %332 = vmatpush1.msra.mxu0 0.0
    %333 = vmatprep.subr.mxu0 0.0
    %334 = vmatpush1.msra.mxu0 0.0
    %335 = vmatprep.subr.mxu0 0.0
    %336 = vmatpush1.msra.mxu0 0.0
    %337 = vmatprep.subr.mxu0 0.0
    %338 = vmatpush1.msra.mxu0 0.0
    %339 = vmatprep.subr.mxu0 0.0
    %340 = vmatpush1.msra.mxu0 0.0
    %341 = vmatprep.subr.mxu0 0.0
    %342 = vmatpush1.msra.mxu0 0.0
    %343 = vmatprep.subr.mxu0 0.0
    %344 = vmatpush1.msra.mxu0 0.0
    %345 = vmatprep.subr.mxu0 0.0
    %346 = vmatpush1.msra.mxu0 0.0
    %347 = vmatprep.subr.mxu0 0.0
    %348 = vmatpush1.msra.mxu0 0.0
    %349 = vmatprep.subr.mxu0 0.0
    %350 = vmatpush1.msra.mxu0 0.0
    %351 = vmatprep.subr.mxu0 0.0
    %352 = vmatpush1.msra.mxu0 0.0
    %353 = vmatprep.subr.mxu0 0.0
    %354 = vmatpush1.msra.mxu0 0.0
    %355 = vmatprep.subr.mxu0 0.0
    %356 = vmatpush1.msra.mxu0 0.0
    %357 = vmatprep.subr.mxu0 0.0
    %358 = vmatpush1.msra.mxu0 0.0
    %359 = vmatprep.subr.mxu0 0.0
    %360 = vmatpush1.msra.mxu0 0.0
    %361 = vmatprep.subr.mxu0 0.0
    %362 = vmatpush1.msra.mxu0 0.0
    %363 = vmatprep.mubr.f32.mxu0 0.0
    %364 = vmatmul.mubr.f32.gmra.mrb[0].mxu0 %v110
    %v365 = vpop.f32.mrb[0].mxu0
    %v366 = vadd.f32 %v91, %v365
    %v367 = vpop.f32.mrb[0].mxu0
    %v368 = vadd.f32 %v91, %v367
    %369 = vmatprep.mubr.f32.mxu0 0.0
    %370 = vmatmul.mubr.f32.gmra.mrb[0].mxu0 %v113
    %v371 = vpop.f32.mrb[0].mxu0
    %v372 = vadd.f32 %v96, %v371
    %v373 = vpop.f32.mrb[0].mxu0
    %v374 = vadd.f32 %v96, %v373
    %375 = vmatprep.mubr.f32.mxu0 0.0
    %376 = vmatmul.mubr.f32.gmra.mrb[0].mxu0 %v116
    %v377 = vpop.f32.mrb[0].mxu0
    %v378 = vadd.f32 %v101, %v377
    %v379 = vpop.f32.mrb[0].mxu0
    %v380 = vadd.f32 %v101, %v379
    %381 = vmatprep.mubr.f32.mxu0 0.0
    %382 = vmatmul.mubr.f32.gmra.mrb[0].mxu0 %v119
    %v383 = vpop.f32.mrb[0].mxu0
    %v384 = vadd.f32 %v106, %v383
    %v385 = vpop.f32.mrb[0].mxu0
    %v386 = vadd.f32 %v106, %v385
    %387 = vdwg.mxu0
    %388 = vmatprep.subr.mxu0 %v71
    %389 = vmatpush1.msra.mxu0 %v70
    %390 = vmatprep.subr.mxu0 %v79
    %391 = vmatpush1.msra.mxu0 %v78
    %392 = vmatprep.subr.mxu0 0.0
    %393 = vmatpush1.msra.mxu0 0.0
    %394 = vmatprep.subr.mxu0 0.0
    %395 = vmatpush1.msra.mxu0 0.0
    %396 = vmatprep.subr.mxu0 0.0
    %397 = vmatpush1.msra.mxu0 0.0
    %398 = vmatprep.subr.mxu0 0.0
    %399 = vmatpush1.msra.mxu0 0.0
    %400 = vmatprep.subr.mxu0 0.0
    %401 = vmatpush1.msra.mxu0 0.0
    %402 = vmatprep.subr.mxu0 0.0
    %403 = vmatpush1.msra.mxu0 0.0
    %404 = vmatprep.subr.mxu0 0.0
    %405 = vmatpush1.msra.mxu0 0.0
    %406 = vmatprep.subr.mxu0 0.0
    %407 = vmatpush1.msra.mxu0 0.0
    %408 = vmatprep.subr.mxu0 0.0
    %409 = vmatpush1.msra.mxu0 0.0
    %410 = vmatprep.subr.mxu0 0.0
    %411 = vmatpush1.msra.mxu0 0.0
    %412 = vmatprep.subr.mxu0 0.0
    %413 = vmatpush1.msra.mxu0 0.0
    %414 = vmatprep.subr.mxu0 0.0
    %415 = vmatpush1.msra.mxu0 0.0
    %416 = vmatprep.subr.mxu0 0.0
    %417 = vmatpush1.msra.mxu0 0.0
    %418 = vmatprep.subr.mxu0 0.0
    %419 = vmatpush1.msra.mxu0 0.0
    %420 = vmatprep.subr.mxu0 0.0
    %421 = vmatpush1.msra.mxu0 0.0
    %422 = vmatprep.subr.mxu0 0.0
    %423 = vmatpush1.msra.mxu0 0.0
    %424 = vmatprep.subr.mxu0 0.0
    %425 = vmatpush1.msra.mxu0 0.0
    %426 = vmatprep.subr.mxu0 0.0
    %427 = vmatpush1.msra.mxu0 0.0
    %428 = vmatprep.subr.mxu0 0.0
    %429 = vmatpush1.msra.mxu0 0.0
    %430 = vmatprep.subr.mxu0 0.0
    %431 = vmatpush1.msra.mxu0 0.0
    %432 = vmatprep.subr.mxu0 0.0
    %433 = vmatpush1.msra.mxu0 0.0
    %434 = vmatprep.subr.mxu0 0.0
    %435 = vmatpush1.msra.mxu0 0.0
    %436 = vmatprep.subr.mxu0 0.0
    %437 = vmatpush1.msra.mxu0 0.0
    %438 = vmatprep.subr.mxu0 0.0
    %439 = vmatpush1.msra.mxu0 0.0
    %440 = vmatprep.subr.mxu0 0.0
    %441 = vmatpush1.msra.mxu0 0.0
    %442 = vmatprep.subr.mxu0 0.0
    %443 = vmatpush1.msra.mxu0 0.0
    %444 = vmatprep.subr.mxu0 0.0
    %445 = vmatpush1.msra.mxu0 0.0
    %446 = vmatprep.subr.mxu0 0.0
    %447 = vmatpush1.msra.mxu0 0.0
    %448 = vmatprep.subr.mxu0 0.0
    %449 = vmatpush1.msra.mxu0 0.0
    %450 = vmatprep.subr.mxu0 0.0
    %451 = vmatpush1.msra.mxu0 0.0
    %452 = vmatprep.mubr.f32.mxu0 0.0
    %453 = vmatmul.mubr.f32.gmra.mrb[0].mxu0 %v110
    %v454 = vpop.f32.mrb[0].mxu0
    %v455 = vadd.f32 %v91, %v454
    %v456 = vpop.f32.mrb[0].mxu0
    %v457 = vadd.f32 %v91, %v456
    %458 = vmatprep.mubr.f32.mxu0 0.0
    %459 = vmatmul.mubr.f32.gmra.mrb[0].mxu0 %v113
    %v460 = vpop.f32.mrb[0].mxu0
    %v461 = vadd.f32 %v96, %v460
    %v462 = vpop.f32.mrb[0].mxu0
    %v463 = vadd.f32 %v96, %v462
    %464 = vmatprep.mubr.f32.mxu0 0.0
    %465 = vmatmul.mubr.f32.gmra.mrb[0].mxu0 %v116
    %v466 = vpop.f32.mrb[0].mxu0
    %v467 = vadd.f32 %v101, %v466
    %v468 = vpop.f32.mrb[0].mxu0
    %v469 = vadd.f32 %v101, %v468
    %470 = vmatprep.mubr.f32.mxu0 0.0
    %471 = vmatmul.mubr.f32.gmra.mrb[0].mxu0 %v119
    %v472 = vpop.f32.mrb[0].mxu0
    %v473 = vadd.f32 %v106, %v472
    %v474 = vpop.f32.mrb[0].mxu0
    %v475 = vadd.f32 %v106, %v474
    %476 = vdwg.mxu0
    %v477 = vmax.f32 %v188, 0.0
    %v478 = vmax.f32 %v190, 0.0
    %v479 = vmax.f32 %v277, 0.0
    %v480 = vmax.f32 %v279, 0.0
    %v481 = vmax.f32 %v366, 0.0
    %v482 = vmax.f32 %v368, 0.0
    %v483 = vmax.f32 %v455, 0.0
    %v484 = vmax.f32 %v457, 0.0
    %v485 = vmax.f32 %v194, 0.0
    %v486 = vmax.f32 %v196, 0.0
    %v487 = vmax.f32 %v283, 0.0
    %v488 = vmax.f32 %v285, 0.0
    %v489 = vmax.f32 %v372, 0.0
    %v490 = vmax.f32 %v374, 0.0
    %v491 = vmax.f32 %v461, 0.0
    %v492 = vmax.f32 %v463, 0.0
    %v493 = vmax.f32 %v200, 0.0
    %v494 = vmax.f32 %v202, 0.0
    %v495 = vmax.f32 %v289, 0.0
    %v496 = vmax.f32 %v291, 0.0
    %v497 = vmax.f32 %v378, 0.0
    %v498 = vmax.f32 %v380, 0.0
    %v499 = vmax.f32 %v467, 0.0
    %v500 = vmax.f32 %v469, 0.0
    %v501 = vmax.f32 %v206, 0.0
    %v502 = vmax.f32 %v208, 0.0
    %v503 = vmax.f32 %v295, 0.0
    %v504 = vmax.f32 %v297, 0.0
    %v505 = vmax.f32 %v384, 0.0
    %v506 = vmax.f32 %v386, 0.0
    %v507 = vmax.f32 %v473, 0.0
    %v508 = vmax.f32 %v475, 0.0
    %v509 = vld [vmem:[%s3] sm:$0xff]
    %v510 = vld [vmem:[%s3 + $0x8] sm:$0xff]
    %v511 = vld [vmem:[%s3 + $0x10] sm:$0xff]
    %v512 = vld [vmem:[%s3 + $0x18] sm:$0xff]
    %v513 = vld [vmem:[%s4] sm:$0xff]
    %v514 = vld [vmem:[%s4 + $0x8] sm:$0xff]
    %v515 = vld [vmem:[%s4 + $0x10] sm:$0xff]
    %v516 = vld [vmem:[%s4 + $0x18] sm:$0xff]
    %518 = vset.pattern.permute.xlu0 0
    %519 = vperm.xlu0 %518, %v513
    %v520 = vpop.permute.xlu0 %519
    %523 = vset.pattern.permute.xlu0 0
    %524 = vperm.xlu0 %523, %v514
    %v525 = vpop.permute.xlu0 %524
    %528 = vset.pattern.permute.xlu0 0
    %529 = vperm.xlu0 %528, %v515
    %v530 = vpop.permute.xlu0 %529
    %533 = vset.pattern.permute.xlu0 0
    %534 = vperm.xlu0 %533, %v516
    %v535 = vpop.permute.xlu0 %534
    %vm537 = vcmask 261120
    %v539 = vsel %vm537, %v509, 0
    %v542 = vsel %vm537, %v510, 0
    %v545 = vsel %vm537, %v511, 0
    %v548 = vsel %vm537, %v512, 0
    %550 = vmatprep.subr.mxu0 %v478
    %551 = vmatpush1.msra.mxu0 %v477
    %552 = vmatprep.subr.mxu0 %v486
    %553 = vmatpush1.msra.mxu0 %v485
    %554 = vmatprep.subr.mxu0 %v494
    %555 = vmatpush1.msra.mxu0 %v493
    %556 = vmatprep.subr.mxu0 %v502
    %557 = vmatpush1.msra.mxu0 %v501
    %558 = vmatprep.subr.mxu0 0.0
    %559 = vmatpush1.msra.mxu0 0.0
    %560 = vmatprep.subr.mxu0 0.0
    %561 = vmatpush1.msra.mxu0 0.0
    %562 = vmatprep.subr.mxu0 0.0
    %563 = vmatpush1.msra.mxu0 0.0
    %564 = vmatprep.subr.mxu0 0.0
    %565 = vmatpush1.msra.mxu0 0.0
    %566 = vmatprep.subr.mxu0 0.0
    %567 = vmatpush1.msra.mxu0 0.0
    %568 = vmatprep.subr.mxu0 0.0
    %569 = vmatpush1.msra.mxu0 0.0
    %570 = vmatprep.subr.mxu0 0.0
    %571 = vmatpush1.msra.mxu0 0.0
    %572 = vmatprep.subr.mxu0 0.0
    %573 = vmatpush1.msra.mxu0 0.0
    %574 = vmatprep.subr.mxu0 0.0
    %575 = vmatpush1.msra.mxu0 0.0
    %576 = vmatprep.subr.mxu0 0.0
    %577 = vmatpush1.msra.mxu0 0.0
    %578 = vmatprep.subr.mxu0 0.0
    %579 = vmatpush1.msra.mxu0 0.0
    %580 = vmatprep.subr.mxu0 0.0
    %581 = vmatpush1.msra.mxu0 0.0
    %582 = vmatprep.subr.mxu0 0.0
    %583 = vmatpush1.msra.mxu0 0.0
    %584 = vmatprep.subr.mxu0 0.0
    %585 = vmatpush1.msra.mxu0 0.0
    %586 = vmatprep.subr.mxu0 0.0
    %587 = vmatpush1.msra.mxu0 0.0
    %588 = vmatprep.subr.mxu0 0.0
    %589 = vmatpush1.msra.mxu0 0.0
    %590 = vmatprep.subr.mxu0 0.0
    %591 = vmatpush1.msra.mxu0 0.0
    %592 = vmatprep.subr.mxu0 0.0
    %593 = vmatpush1.msra.mxu0 0.0
    %594 = vmatprep.subr.mxu0 0.0
    %595 = vmatpush1.msra.mxu0 0.0
    %596 = vmatprep.subr.mxu0 0.0
    %597 = vmatpush1.msra.mxu0 0.0
    %598 = vmatprep.subr.mxu0 0.0
    %599 = vmatpush1.msra.mxu0 0.0
    %600 = vmatprep.subr.mxu0 0.0
    %601 = vmatpush1.msra.mxu0 0.0
    %602 = vmatprep.subr.mxu0 0.0
    %603 = vmatpush1.msra.mxu0 0.0
    %604 = vmatprep.subr.mxu0 0.0
    %605 = vmatpush1.msra.mxu0 0.0
    %606 = vmatprep.subr.mxu0 0.0
    %607 = vmatpush1.msra.mxu0 0.0
    %608 = vmatprep.subr.mxu0 0.0
    %609 = vmatpush1.msra.mxu0 0.0
    %610 = vmatprep.subr.mxu0 0.0
    %611 = vmatpush1.msra.mxu0 0.0
    %612 = vmatprep.subr.mxu0 0.0
    %613 = vmatpush1.msra.mxu0 0.0
    %614 = vmatprep.mubr.f32.mxu0 0.0
    %615 = vmatmul.mubr.f32.gmra.mrb[0].mxu0 %v539
    %v616 = vpop.f32.mrb[0].mxu0
    %v617 = vadd.f32 %v520, %v616
    %v618 = vpop.f32.mrb[0].mxu0
    %v619 = vadd.f32 %v520, %v618
    %620 = vmatprep.mubr.f32.mxu0 0.0
    %621 = vmatmul.mubr.f32.gmra.mrb[0].mxu0 %v542
    %v622 = vpop.f32.mrb[0].mxu0
    %v623 = vadd.f32 %v525, %v622
    %v624 = vpop.f32.mrb[0].mxu0
    %v625 = vadd.f32 %v525, %v624
    %626 = vmatprep.mubr.f32.mxu0 0.0
    %627 = vmatmul.mubr.f32.gmra.mrb[0].mxu0 %v545
    %v628 = vpop.f32.mrb[0].mxu0
    %v629 = vadd.f32 %v530, %v628
    %v630 = vpop.f32.mrb[0].mxu0
    %v631 = vadd.f32 %v530, %v630
    %632 = vmatprep.mubr.f32.mxu0 0.0
    %633 = vmatmul.mubr.f32.gmra.mrb[0].mxu0 %v548
    %v634 = vpop.f32.mrb[0].mxu0
    %v635 = vadd.f32 %v535, %v634
    %v636 = vpop.f32.mrb[0].mxu0
    %v637 = vadd.f32 %v535, %v636
    %638 = vdwg.mxu0
    %639 = vmatprep.subr.mxu0 %v480
    %640 = vmatpush1.msra.mxu0 %v479
    %641 = vmatprep.subr.mxu0 %v488
    %642 = vmatpush1.msra.mxu0 %v487
    %643 = vmatprep.subr.mxu0 %v496
    %644 = vmatpush1.msra.mxu0 %v495
    %645 = vmatprep.subr.mxu0 %v504
    %646 = vmatpush1.msra.mxu0 %v503
    %647 = vmatprep.subr.mxu0 0.0
    %648 = vmatpush1.msra.mxu0 0.0
    %649 = vmatprep.subr.mxu0 0.0
    %650 = vmatpush1.msra.mxu0 0.0
    %651 = vmatprep.subr.mxu0 0.0
    %652 = vmatpush1.msra.mxu0 0.0
    %653 = vmatprep.subr.mxu0 0.0
    %654 = vmatpush1.msra.mxu0 0.0
    %655 = vmatprep.subr.mxu0 0.0
    %656 = vmatpush1.msra.mxu0 0.0
    %657 = vmatprep.subr.mxu0 0.0
    %658 = vmatpush1.msra.mxu0 0.0
    %659 = vmatprep.subr.mxu0 0.0
    %660 = vmatpush1.msra.mxu0 0.0
    %661 = vmatprep.subr.mxu0 0.0
    %662 = vmatpush1.msra.mxu0 0.0
    %663 = vmatprep.subr.mxu0 0.0
    %664 = vmatpush1.msra.mxu0 0.0
    %665 = vmatprep.subr.mxu0 0.0
    %666 = vmatpush1.msra.mxu0 0.0
    %667 = vmatprep.subr.mxu0 0.0
    %668 = vmatpush1.msra.mxu0 0.0
    %669 = vmatprep.subr.mxu0 0.0
    %670 = vmatpush1.msra.mxu0 0.0
    %671 = vmatprep.subr.mxu0 0.0
    %672 = vmatpush1.msra.mxu0 0.0
    %673 = vmatprep.subr.mxu0 0.0
    %674 = vmatpush1.msra.mxu0 0.0
    %675 = vmatprep.subr.mxu0 0.0
    %676 = vmatpush1.msra.mxu0 0.0
    %677 = vmatprep.subr.mxu0 0.0
    %678 = vmatpush1.msra.mxu0 0.0
    %679 = vmatprep.subr.mxu0 0.0
    %680 = vmatpush1.msra.mxu0 0.0
    %681 = vmatprep.subr.mxu0 0.0
    %682 = vmatpush1.msra.mxu0 0.0
    %683 = vmatprep.subr.mxu0 0.0
    %684 = vmatpush1.msra.mxu0 0.0
    %685 = vmatprep.subr.mxu0 0.0
    %686 = vmatpush1.msra.mxu0 0.0
    %687 = vmatprep.subr.mxu0 0.0
    %688 = vmatpush1.msra.mxu0 0.0
    %689 = vmatprep.subr.mxu0 0.0
    %690 = vmatpush1.msra.mxu0 0.0
    %691 = vmatprep.subr.mxu0 0.0
    %692 = vmatpush1.msra.mxu0 0.0
    %693 = vmatprep.subr.mxu0 0.0
    %694 = vmatpush1.msra.mxu0 0.0
    %695 = vmatprep.subr.mxu0 0.0
    %696 = vmatpush1.msra.mxu0 0.0
    %697 = vmatprep.subr.mxu0 0.0
    %698 = vmatpush1.msra.mxu0 0.0
    %699 = vmatprep.subr.mxu0 0.0
    %700 = vmatpush1.msra.mxu0 0.0
    %701 = vmatprep.subr.mxu0 0.0
    %702 = vmatpush1.msra.mxu0 0.0
    %703 = vmatprep.mubr.f32.mxu0 0.0
    %704 = vmatmul.mubr.f32.gmra.mrb[0].mxu0 %v539
    %v705 = vpop.f32.mrb[0].mxu0
    %v706 = vadd.f32 %v520, %v705
    %v707 = vpop.f32.mrb[0].mxu0
    %v708 = vadd.f32 %v520, %v707
    %709 = vmatprep.mubr.f32.mxu0 0.0
    %710 = vmatmul.mubr.f32.gmra.mrb[0].mxu0 %v542
    %v711 = vpop.f32.mrb[0].mxu0
    %v712 = vadd.f32 %v525, %v711
    %v713 = vpop.f32.mrb[0].mxu0
    %v714 = vadd.f32 %v525, %v713
    %715 = vmatprep.mubr.f32.mxu0 0.0
    %716 = vmatmul.mubr.f32.gmra.mrb[0].mxu0 %v545
    %v717 = vpop.f32.mrb[0].mxu0
    %v718 = vadd.f32 %v530, %v717
    %v719 = vpop.f32.mrb[0].mxu0
    %v720 = vadd.f32 %v530, %v719
    %721 = vmatprep.mubr.f32.mxu0 0.0
    %722 = vmatmul.mubr.f32.gmra.mrb[0].mxu0 %v548
    %v723 = vpop.f32.mrb[0].mxu0
    %v724 = vadd.f32 %v535, %v723
    %v725 = vpop.f32.mrb[0].mxu0
    %v726 = vadd.f32 %v535, %v725
    %727 = vdwg.mxu0
    %728 = vmatprep.subr.mxu0 %v482
    %729 = vmatpush1.msra.mxu0 %v481
    %730 = vmatprep.subr.mxu0 %v490
    %731 = vmatpush1.msra.mxu0 %v489
    %732 = vmatprep.subr.mxu0 %v498
    %733 = vmatpush1.msra.mxu0 %v497
    %734 = vmatprep.subr.mxu0 %v506
    %735 = vmatpush1.msra.mxu0 %v505
    %736 = vmatprep.subr.mxu0 0.0
    %737 = vmatpush1.msra.mxu0 0.0
    %738 = vmatprep.subr.mxu0 0.0
    %739 = vmatpush1.msra.mxu0 0.0
    %740 = vmatprep.subr.mxu0 0.0
    %741 = vmatpush1.msra.mxu0 0.0
    %742 = vmatprep.subr.mxu0 0.0
    %743 = vmatpush1.msra.mxu0 0.0
    %744 = vmatprep.subr.mxu0 0.0
    %745 = vmatpush1.msra.mxu0 0.0
    %746 = vmatprep.subr.mxu0 0.0
    %747 = vmatpush1.msra.mxu0 0.0
    %748 = vmatprep.subr.mxu0 0.0
    %749 = vmatpush1.msra.mxu0 0.0
    %750 = vmatprep.subr.mxu0 0.0
    %751 = vmatpush1.msra.mxu0 0.0
    %752 = vmatprep.subr.mxu0 0.0
    %753 = vmatpush1.msra.mxu0 0.0
    %754 = vmatprep.subr.mxu0 0.0
    %755 = vmatpush1.msra.mxu0 0.0
    %756 = vmatprep.subr.mxu0 0.0
    %757 = vmatpush1.msra.mxu0 0.0
    %758 = vmatprep.subr.mxu0 0.0
    %759 = vmatpush1.msra.mxu0 0.0
    %760 = vmatprep.subr.mxu0 0.0
    %761 = vmatpush1.msra.mxu0 0.0
    %762 = vmatprep.subr.mxu0 0.0
    %763 = vmatpush1.msra.mxu0 0.0
    %764 = vmatprep.subr.mxu0 0.0
    %765 = vmatpush1.msra.mxu0 0.0
    %766 = vmatprep.subr.mxu0 0.0
    %767 = vmatpush1.msra.mxu0 0.0
    %768 = vmatprep.subr.mxu0 0.0
    %769 = vmatpush1.msra.mxu0 0.0
    %770 = vmatprep.subr.mxu0 0.0
    %771 = vmatpush1.msra.mxu0 0.0
    %772 = vmatprep.subr.mxu0 0.0
    %773 = vmatpush1.msra.mxu0 0.0
    %774 = vmatprep.subr.mxu0 0.0
    %775 = vmatpush1.msra.mxu0 0.0
    %776 = vmatprep.subr.mxu0 0.0
    %777 = vmatpush1.msra.mxu0 0.0
    %778 = vmatprep.subr.mxu0 0.0
    %779 = vmatpush1.msra.mxu0 0.0
    %780 = vmatprep.subr.mxu0 0.0
    %781 = vmatpush1.msra.mxu0 0.0
    %782 = vmatprep.subr.mxu0 0.0
    %783 = vmatpush1.msra.mxu0 0.0
    %784 = vmatprep.subr.mxu0 0.0
    %785 = vmatpush1.msra.mxu0 0.0
    %786 = vmatprep.subr.mxu0 0.0
    %787 = vmatpush1.msra.mxu0 0.0
    %788 = vmatprep.subr.mxu0 0.0
    %789 = vmatpush1.msra.mxu0 0.0
    %790 = vmatprep.subr.mxu0 0.0
    %791 = vmatpush1.msra.mxu0 0.0
    %792 = vmatprep.mubr.f32.mxu0 0.0
    %793 = vmatmul.mubr.f32.gmra.mrb[0].mxu0 %v539
    %v794 = vpop.f32.mrb[0].mxu0
    %v795 = vadd.f32 %v520, %v794
    %v796 = vpop.f32.mrb[0].mxu0
    %v797 = vadd.f32 %v520, %v796
    %798 = vmatprep.mubr.f32.mxu0 0.0
    %799 = vmatmul.mubr.f32.gmra.mrb[0].mxu0 %v542
    %v800 = vpop.f32.mrb[0].mxu0
    %v801 = vadd.f32 %v525, %v800
    %v802 = vpop.f32.mrb[0].mxu0
    %v803 = vadd.f32 %v525, %v802
    %804 = vmatprep.mubr.f32.mxu0 0.0
    %805 = vmatmul.mubr.f32.gmra.mrb[0].mxu0 %v545
    %v806 = vpop.f32.mrb[0].mxu0
    %v807 = vadd.f32 %v530, %v806
    %v808 = vpop.f32.mrb[0].mxu0
    %v809 = vadd.f32 %v530, %v808
    %810 = vmatprep.mubr.f32.mxu0 0.0
    %811 = vmatmul.mubr.f32.gmra.mrb[0].mxu0 %v548
    %v812 = vpop.f32.mrb[0].mxu0
    %v813 = vadd.f32 %v535, %v812
    %v814 = vpop.f32.mrb[0].mxu0
    %v815 = vadd.f32 %v535, %v814
    %816 = vdwg.mxu0
    %817 = vmatprep.subr.mxu0 %v484
    %818 = vmatpush1.msra.mxu0 %v483
    %819 = vmatprep.subr.mxu0 %v492
    %820 = vmatpush1.msra.mxu0 %v491
    %821 = vmatprep.subr.mxu0 %v500
    %822 = vmatpush1.msra.mxu0 %v499
    %823 = vmatprep.subr.mxu0 %v508
    %824 = vmatpush1.msra.mxu0 %v507
    %825 = vmatprep.subr.mxu0 0.0
    %826 = vmatpush1.msra.mxu0 0.0
    %827 = vmatprep.subr.mxu0 0.0
    %828 = vmatpush1.msra.mxu0 0.0
    %829 = vmatprep.subr.mxu0 0.0
    %830 = vmatpush1.msra.mxu0 0.0
    %831 = vmatprep.subr.mxu0 0.0
    %832 = vmatpush1.msra.mxu0 0.0
    %833 = vmatprep.subr.mxu0 0.0
    %834 = vmatpush1.msra.mxu0 0.0
    %835 = vmatprep.subr.mxu0 0.0
    %836 = vmatpush1.msra.mxu0 0.0
    %837 = vmatprep.subr.mxu0 0.0
    %838 = vmatpush1.msra.mxu0 0.0
    %839 = vmatprep.subr.mxu0 0.0
    %840 = vmatpush1.msra.mxu0 0.0
    %841 = vmatprep.subr.mxu0 0.0
    %842 = vmatpush1.msra.mxu0 0.0
    %843 = vmatprep.subr.mxu0 0.0
    %844 = vmatpush1.msra.mxu0 0.0
    %845 = vmatprep.subr.mxu0 0.0
    %846 = vmatpush1.msra.mxu0 0.0
    %847 = vmatprep.subr.mxu0 0.0
    %848 = vmatpush1.msra.mxu0 0.0
    %849 = vmatprep.subr.mxu0 0.0
    %850 = vmatpush1.msra.mxu0 0.0
    %851 = vmatprep.subr.mxu0 0.0
    %852 = vmatpush1.msra.mxu0 0.0
    %853 = vmatprep.subr.mxu0 0.0
    %854 = vmatpush1.msra.mxu0 0.0
    %855 = vmatprep.subr.mxu0 0.0
    %856 = vmatpush1.msra.mxu0 0.0
    %857 = vmatprep.subr.mxu0 0.0
    %858 = vmatpush1.msra.mxu0 0.0
    %859 = vmatprep.subr.mxu0 0.0
    %860 = vmatpush1.msra.mxu0 0.0
    %861 = vmatprep.subr.mxu0 0.0
    %862 = vmatpush1.msra.mxu0 0.0
    %863 = vmatprep.subr.mxu0 0.0
    %864 = vmatpush1.msra.mxu0 0.0
    %865 = vmatprep.subr.mxu0 0.0
    %866 = vmatpush1.msra.mxu0 0.0
    %867 = vmatprep.subr.mxu0 0.0
    %868 = vmatpush1.msra.mxu0 0.0
    %869 = vmatprep.subr.mxu0 0.0
    %870 = vmatpush1.msra.mxu0 0.0
    %871 = vmatprep.subr.mxu0 0.0
    %872 = vmatpush1.msra.mxu0 0.0
    %873 = vmatprep.subr.mxu0 0.0
    %874 = vmatpush1.msra.mxu0 0.0
    %875 = vmatprep.subr.mxu0 0.0
    %876 = vmatpush1.msra.mxu0 0.0
    %877 = vmatprep.subr.mxu0 0.0
    %878 = vmatpush1.msra.mxu0 0.0
    %879 = vmatprep.subr.mxu0 0.0
    %880 = vmatpush1.msra.mxu0 0.0
    %881 = vmatprep.mubr.f32.mxu0 0.0
    %882 = vmatmul.mubr.f32.gmra.mrb[0].mxu0 %v539
    %v883 = vpop.f32.mrb[0].mxu0
    %v884 = vadd.f32 %v520, %v883
    %v885 = vpop.f32.mrb[0].mxu0
    %v886 = vadd.f32 %v520, %v885
    %887 = vmatprep.mubr.f32.mxu0 0.0
    %888 = vmatmul.mubr.f32.gmra.mrb[0].mxu0 %v542
    %v889 = vpop.f32.mrb[0].mxu0
    %v890 = vadd.f32 %v525, %v889
    %v891 = vpop.f32.mrb[0].mxu0
    %v892 = vadd.f32 %v525, %v891
    %893 = vmatprep.mubr.f32.mxu0 0.0
    %894 = vmatmul.mubr.f32.gmra.mrb[0].mxu0 %v545
    %v895 = vpop.f32.mrb[0].mxu0
    %v896 = vadd.f32 %v530, %v895
    %v897 = vpop.f32.mrb[0].mxu0
    %v898 = vadd.f32 %v530, %v897
    %899 = vmatprep.mubr.f32.mxu0 0.0
    %900 = vmatmul.mubr.f32.gmra.mrb[0].mxu0 %v548
    %v901 = vpop.f32.mrb[0].mxu0
    %v902 = vadd.f32 %v535, %v901
    %v903 = vpop.f32.mrb[0].mxu0
    %v904 = vadd.f32 %v535, %v903
    %905 = vdwg.mxu0
    %v906 = vmax.f32 %v617, 0.0
    %v907 = vmax.f32 %v619, 0.0
    %v908 = vmax.f32 %v706, 0.0
    %v909 = vmax.f32 %v708, 0.0
    %v910 = vmax.f32 %v795, 0.0
    %v911 = vmax.f32 %v797, 0.0
    %v912 = vmax.f32 %v884, 0.0
    %v913 = vmax.f32 %v886, 0.0
    %v914 = vmax.f32 %v623, 0.0
    %v915 = vmax.f32 %v625, 0.0
    %v916 = vmax.f32 %v712, 0.0
    %v917 = vmax.f32 %v714, 0.0
    %v918 = vmax.f32 %v801, 0.0
    %v919 = vmax.f32 %v803, 0.0
    %v920 = vmax.f32 %v890, 0.0
    %v921 = vmax.f32 %v892, 0.0
    %v922 = vmax.f32 %v629, 0.0
    %v923 = vmax.f32 %v631, 0.0
    %v924 = vmax.f32 %v718, 0.0
    %v925 = vmax.f32 %v720, 0.0
    %v926 = vmax.f32 %v807, 0.0
    %v927 = vmax.f32 %v809, 0.0
    %v928 = vmax.f32 %v896, 0.0
    %v929 = vmax.f32 %v898, 0.0
    %v930 = vmax.f32 %v635, 0.0
    %v931 = vmax.f32 %v637, 0.0
    %v932 = vmax.f32 %v724, 0.0
    %v933 = vmax.f32 %v726, 0.0
    %v934 = vmax.f32 %v813, 0.0
    %v935 = vmax.f32 %v815, 0.0
    %v936 = vmax.f32 %v902, 0.0
    %v937 = vmax.f32 %v904, 0.0
    %v938 = vld [vmem:[%s5] sm:$0xff]
    %v939 = vld [vmem:[%s6] sm:$0xff]
    %941 = vset.pattern.permute.xlu0 0
    %942 = vperm.xlu0 %941, %v939
    %v943 = vpop.permute.xlu0 %942
    %v946 = vsel %vm537, %v938, 0
    %948 = vmatprep.subr.mxu0 %v907
    %949 = vmatpush1.msra.mxu0 %v906
    %950 = vmatprep.subr.mxu0 %v915
    %951 = vmatpush1.msra.mxu0 %v914
    %952 = vmatprep.subr.mxu0 %v923
    %953 = vmatpush1.msra.mxu0 %v922
    %954 = vmatprep.subr.mxu0 %v931
    %955 = vmatpush1.msra.mxu0 %v930
    %956 = vmatprep.subr.mxu0 0.0
    %957 = vmatpush1.msra.mxu0 0.0
    %958 = vmatprep.subr.mxu0 0.0
    %959 = vmatpush1.msra.mxu0 0.0
    %960 = vmatprep.subr.mxu0 0.0
    %961 = vmatpush1.msra.mxu0 0.0
    %962 = vmatprep.subr.mxu0 0.0
    %963 = vmatpush1.msra.mxu0 0.0
    %964 = vmatprep.subr.mxu0 0.0
    %965 = vmatpush1.msra.mxu0 0.0
    %966 = vmatprep.subr.mxu0 0.0
    %967 = vmatpush1.msra.mxu0 0.0
    %968 = vmatprep.subr.mxu0 0.0
    %969 = vmatpush1.msra.mxu0 0.0
    %970 = vmatprep.subr.mxu0 0.0
    %971 = vmatpush1.msra.mxu0 0.0
    %972 = vmatprep.subr.mxu0 0.0
    %973 = vmatpush1.msra.mxu0 0.0
    %974 = vmatprep.subr.mxu0 0.0
    %975 = vmatpush1.msra.mxu0 0.0
    %976 = vmatprep.subr.mxu0 0.0
    %977 = vmatpush1.msra.mxu0 0.0
    %978 = vmatprep.subr.mxu0 0.0
    %979 = vmatpush1.msra.mxu0 0.0
    %980 = vmatprep.subr.mxu0 0.0
    %981 = vmatpush1.msra.mxu0 0.0
    %982 = vmatprep.subr.mxu0 0.0
    %983 = vmatpush1.msra.mxu0 0.0
    %984 = vmatprep.subr.mxu0 0.0
    %985 = vmatpush1.msra.mxu0 0.0
    %986 = vmatprep.subr.mxu0 0.0
    %987 = vmatpush1.msra.mxu0 0.0
    %988 = vmatprep.subr.mxu0 0.0
    %989 = vmatpush1.msra.mxu0 0.0
    %990 = vmatprep.subr.mxu0 0.0
    %991 = vmatpush1.msra.mxu0 0.0
    %992 = vmatprep.subr.mxu0 0.0
    %993 = vmatpush1.msra.mxu0 0.0
    %994 = vmatprep.subr.mxu0 0.0
    %995 = vmatpush1.msra.mxu0 0.0
    %996 = vmatprep.subr.mxu0 0.0
    %997 = vmatpush1.msra.mxu0 0.0
    %998 = vmatprep.subr.mxu0 0.0
    %999 = vmatpush1.msra.mxu0 0.0
    %1000 = vmatprep.subr.mxu0 0.0
    %1001 = vmatpush1.msra.mxu0 0.0
    %1002 = vmatprep.subr.mxu0 0.0
    %1003 = vmatpush1.msra.mxu0 0.0
    %1004 = vmatprep.subr.mxu0 0.0
    %1005 = vmatpush1.msra.mxu0 0.0
    %1006 = vmatprep.subr.mxu0 0.0
    %1007 = vmatpush1.msra.mxu0 0.0
    %1008 = vmatprep.subr.mxu0 0.0
    %1009 = vmatpush1.msra.mxu0 0.0
    %1010 = vmatprep.subr.mxu0 0.0
    %1011 = vmatpush1.msra.mxu0 0.0
    %1012 = vmatprep.mubr.f32.mxu0 0.0
    %1013 = vmatmul.mubr.f32.gmra.mrb[0].mxu0 %v946
    %v1014 = vpop.f32.mrb[0].mxu0
    %v1015 = vadd.f32 %v943, %v1014
    %v1016 = vpop.f32.mrb[0].mxu0
    %v1017 = vadd.f32 %v943, %v1016
    %1018 = vdwg.mxu0
    %1019 = vmatprep.subr.mxu0 %v909
    %1020 = vmatpush1.msra.mxu0 %v908
    %1021 = vmatprep.subr.mxu0 %v917
    %1022 = vmatpush1.msra.mxu0 %v916
    %1023 = vmatprep.subr.mxu0 %v925
    %1024 = vmatpush1.msra.mxu0 %v924
    %1025 = vmatprep.subr.mxu0 %v933
    %1026 = vmatpush1.msra.mxu0 %v932
    %1027 = vmatprep.subr.mxu0 0.0
    %1028 = vmatpush1.msra.mxu0 0.0
    %1029 = vmatprep.subr.mxu0 0.0
    %1030 = vmatpush1.msra.mxu0 0.0
    %1031 = vmatprep.subr.mxu0 0.0
    %1032 = vmatpush1.msra.mxu0 0.0
    %1033 = vmatprep.subr.mxu0 0.0
    %1034 = vmatpush1.msra.mxu0 0.0
    %1035 = vmatprep.subr.mxu0 0.0
    %1036 = vmatpush1.msra.mxu0 0.0
    %1037 = vmatprep.subr.mxu0 0.0
    %1038 = vmatpush1.msra.mxu0 0.0
    %1039 = vmatprep.subr.mxu0 0.0
    %1040 = vmatpush1.msra.mxu0 0.0
    %1041 = vmatprep.subr.mxu0 0.0
    %1042 = vmatpush1.msra.mxu0 0.0
    %1043 = vmatprep.subr.mxu0 0.0
    %1044 = vmatpush1.msra.mxu0 0.0
    %1045 = vmatprep.subr.mxu0 0.0
    %1046 = vmatpush1.msra.mxu0 0.0
    %1047 = vmatprep.subr.mxu0 0.0
    %1048 = vmatpush1.msra.mxu0 0.0
    %1049 = vmatprep.subr.mxu0 0.0
    %1050 = vmatpush1.msra.mxu0 0.0
    %1051 = vmatprep.subr.mxu0 0.0
    %1052 = vmatpush1.msra.mxu0 0.0
    %1053 = vmatprep.subr.mxu0 0.0
    %1054 = vmatpush1.msra.mxu0 0.0
    %1055 = vmatprep.subr.mxu0 0.0
    %1056 = vmatpush1.msra.mxu0 0.0
    %1057 = vmatprep.subr.mxu0 0.0
    %1058 = vmatpush1.msra.mxu0 0.0
    %1059 = vmatprep.subr.mxu0 0.0
    %1060 = vmatpush1.msra.mxu0 0.0
    %1061 = vmatprep.subr.mxu0 0.0
    %1062 = vmatpush1.msra.mxu0 0.0
    %1063 = vmatprep.subr.mxu0 0.0
    %1064 = vmatpush1.msra.mxu0 0.0
    %1065 = vmatprep.subr.mxu0 0.0
    %1066 = vmatpush1.msra.mxu0 0.0
    %1067 = vmatprep.subr.mxu0 0.0
    %1068 = vmatpush1.msra.mxu0 0.0
    %1069 = vmatprep.subr.mxu0 0.0
    %1070 = vmatpush1.msra.mxu0 0.0
    %1071 = vmatprep.subr.mxu0 0.0
    %1072 = vmatpush1.msra.mxu0 0.0
    %1073 = vmatprep.subr.mxu0 0.0
    %1074 = vmatpush1.msra.mxu0 0.0
    %1075 = vmatprep.subr.mxu0 0.0
    %1076 = vmatpush1.msra.mxu0 0.0
    %1077 = vmatprep.subr.mxu0 0.0
    %1078 = vmatpush1.msra.mxu0 0.0
    %1079 = vmatprep.subr.mxu0 0.0
    %1080 = vmatpush1.msra.mxu0 0.0
    %1081 = vmatprep.subr.mxu0 0.0
    %1082 = vmatpush1.msra.mxu0 0.0
    %1083 = vmatprep.mubr.f32.mxu0 0.0
    %1084 = vmatmul.mubr.f32.gmra.mrb[0].mxu0 %v946
    %v1085 = vpop.f32.mrb[0].mxu0
    %v1086 = vadd.f32 %v943, %v1085
    %v1087 = vpop.f32.mrb[0].mxu0
    %v1088 = vadd.f32 %v943, %v1087
    %1089 = vdwg.mxu0
    %1090 = vmatprep.subr.mxu0 %v911
    %1091 = vmatpush1.msra.mxu0 %v910
    %1092 = vmatprep.subr.mxu0 %v919
    %1093 = vmatpush1.msra.mxu0 %v918
    %1094 = vmatprep.subr.mxu0 %v927
    %1095 = vmatpush1.msra.mxu0 %v926
    %1096 = vmatprep.subr.mxu0 %v935
    %1097 = vmatpush1.msra.mxu0 %v934
    %1098 = vmatprep.subr.mxu0 0.0
    %1099 = vmatpush1.msra.mxu0 0.0
    %1100 = vmatprep.subr.mxu0 0.0
    %1101 = vmatpush1.msra.mxu0 0.0
    %1102 = vmatprep.subr.mxu0 0.0
    %1103 = vmatpush1.msra.mxu0 0.0
    %1104 = vmatprep.subr.mxu0 0.0
    %1105 = vmatpush1.msra.mxu0 0.0
    %1106 = vmatprep.subr.mxu0 0.0
    %1107 = vmatpush1.msra.mxu0 0.0
    %1108 = vmatprep.subr.mxu0 0.0
    %1109 = vmatpush1.msra.mxu0 0.0
    %1110 = vmatprep.subr.mxu0 0.0
    %1111 = vmatpush1.msra.mxu0 0.0
    %1112 = vmatprep.subr.mxu0 0.0
    %1113 = vmatpush1.msra.mxu0 0.0
    %1114 = vmatprep.subr.mxu0 0.0
    %1115 = vmatpush1.msra.mxu0 0.0
    %1116 = vmatprep.subr.mxu0 0.0
    %1117 = vmatpush1.msra.mxu0 0.0
    %1118 = vmatprep.subr.mxu0 0.0
    %1119 = vmatpush1.msra.mxu0 0.0
    %1120 = vmatprep.subr.mxu0 0.0
    %1121 = vmatpush1.msra.mxu0 0.0
    %1122 = vmatprep.subr.mxu0 0.0
    %1123 = vmatpush1.msra.mxu0 0.0
    %1124 = vmatprep.subr.mxu0 0.0
    %1125 = vmatpush1.msra.mxu0 0.0
    %1126 = vmatprep.subr.mxu0 0.0
    %1127 = vmatpush1.msra.mxu0 0.0
    %1128 = vmatprep.subr.mxu0 0.0
    %1129 = vmatpush1.msra.mxu0 0.0
    %1130 = vmatprep.subr.mxu0 0.0
    %1131 = vmatpush1.msra.mxu0 0.0
    %1132 = vmatprep.subr.mxu0 0.0
    %1133 = vmatpush1.msra.mxu0 0.0
    %1134 = vmatprep.subr.mxu0 0.0
    %1135 = vmatpush1.msra.mxu0 0.0
    %1136 = vmatprep.subr.mxu0 0.0
    %1137 = vmatpush1.msra.mxu0 0.0
    %1138 = vmatprep.subr.mxu0 0.0
    %1139 = vmatpush1.msra.mxu0 0.0
    %1140 = vmatprep.subr.mxu0 0.0
    %1141 = vmatpush1.msra.mxu0 0.0
    %1142 = vmatprep.subr.mxu0 0.0
    %1143 = vmatpush1.msra.mxu0 0.0
    %1144 = vmatprep.subr.mxu0 0.0
    %1145 = vmatpush1.msra.mxu0 0.0
    %1146 = vmatprep.subr.mxu0 0.0
    %1147 = vmatpush1.msra.mxu0 0.0
    %1148 = vmatprep.subr.mxu0 0.0
    %1149 = vmatpush1.msra.mxu0 0.0
    %1150 = vmatprep.subr.mxu0 0.0
    %1151 = vmatpush1.msra.mxu0 0.0
    %1152 = vmatprep.subr.mxu0 0.0
    %1153 = vmatpush1.msra.mxu0 0.0
    %1154 = vmatprep.mubr.f32.mxu0 0.0
    %1155 = vmatmul.mubr.f32.gmra.mrb[0].mxu0 %v946
    %v1156 = vpop.f32.mrb[0].mxu0
    %v1157 = vadd.f32 %v943, %v1156
    %v1158 = vpop.f32.mrb[0].mxu0
    %v1159 = vadd.f32 %v943, %v1158
    %1160 = vdwg.mxu0
    %1161 = vmatprep.subr.mxu0 %v913
    %1162 = vmatpush1.msra.mxu0 %v912
    %1163 = vmatprep.subr.mxu0 %v921
    %1164 = vmatpush1.msra.mxu0 %v920
    %1165 = vmatprep.subr.mxu0 %v929
    %1166 = vmatpush1.msra.mxu0 %v928
    %1167 = vmatprep.subr.mxu0 %v937
    %1168 = vmatpush1.msra.mxu0 %v936
    %1169 = vmatprep.subr.mxu0 0.0
    %1170 = vmatpush1.msra.mxu0 0.0
    %1171 = vmatprep.subr.mxu0 0.0
    %1172 = vmatpush1.msra.mxu0 0.0
    %1173 = vmatprep.subr.mxu0 0.0
    %1174 = vmatpush1.msra.mxu0 0.0
    %1175 = vmatprep.subr.mxu0 0.0
    %1176 = vmatpush1.msra.mxu0 0.0
    %1177 = vmatprep.subr.mxu0 0.0
    %1178 = vmatpush1.msra.mxu0 0.0
    %1179 = vmatprep.subr.mxu0 0.0
    %1180 = vmatpush1.msra.mxu0 0.0
    %1181 = vmatprep.subr.mxu0 0.0
    %1182 = vmatpush1.msra.mxu0 0.0
    %1183 = vmatprep.subr.mxu0 0.0
    %1184 = vmatpush1.msra.mxu0 0.0
    %1185 = vmatprep.subr.mxu0 0.0
    %1186 = vmatpush1.msra.mxu0 0.0
    %1187 = vmatprep.subr.mxu0 0.0
    %1188 = vmatpush1.msra.mxu0 0.0
    %1189 = vmatprep.subr.mxu0 0.0
    %1190 = vmatpush1.msra.mxu0 0.0
    %1191 = vmatprep.subr.mxu0 0.0
    %1192 = vmatpush1.msra.mxu0 0.0
    %1193 = vmatprep.subr.mxu0 0.0
    %1194 = vmatpush1.msra.mxu0 0.0
    %1195 = vmatprep.subr.mxu0 0.0
    %1196 = vmatpush1.msra.mxu0 0.0
    %1197 = vmatprep.subr.mxu0 0.0
    %1198 = vmatpush1.msra.mxu0 0.0
    %1199 = vmatprep.subr.mxu0 0.0
    %1200 = vmatpush1.msra.mxu0 0.0
    %1201 = vmatprep.subr.mxu0 0.0
    %1202 = vmatpush1.msra.mxu0 0.0
    %1203 = vmatprep.subr.mxu0 0.0
    %1204 = vmatpush1.msra.mxu0 0.0
    %1205 = vmatprep.subr.mxu0 0.0
    %1206 = vmatpush1.msra.mxu0 0.0
    %1207 = vmatprep.subr.mxu0 0.0
    %1208 = vmatpush1.msra.mxu0 0.0
    %1209 = vmatprep.subr.mxu0 0.0
    %1210 = vmatpush1.msra.mxu0 0.0
    %1211 = vmatprep.subr.mxu0 0.0
    %1212 = vmatpush1.msra.mxu0 0.0
    %1213 = vmatprep.subr.mxu0 0.0
    %1214 = vmatpush1.msra.mxu0 0.0
    %1215 = vmatprep.subr.mxu0 0.0
    %1216 = vmatpush1.msra.mxu0 0.0
    %1217 = vmatprep.subr.mxu0 0.0
    %1218 = vmatpush1.msra.mxu0 0.0
    %1219 = vmatprep.subr.mxu0 0.0
    %1220 = vmatpush1.msra.mxu0 0.0
    %1221 = vmatprep.subr.mxu0 0.0
    %1222 = vmatpush1.msra.mxu0 0.0
    %1223 = vmatprep.subr.mxu0 0.0
    %1224 = vmatpush1.msra.mxu0 0.0
    %1225 = vmatprep.mubr.f32.mxu0 0.0
    %1226 = vmatmul.mubr.f32.gmra.mrb[0].mxu0 %v946
    %v1227 = vpop.f32.mrb[0].mxu0
    %v1228 = vadd.f32 %v943, %v1227
    %v1229 = vpop.f32.mrb[0].mxu0
    %v1230 = vadd.f32 %v943, %v1229
    %1231 = vdwg.mxu0
    %1232 = vst [vmem:[#allocation3] sm:$0xff] %v1015
    %1233 = vst [vmem:[#allocation3 + $0x8] sm:$0xff] %v1017
    %1234 = vst [vmem:[#allocation3 + $0x10] sm:$0xff] %v1086
    %1235 = vst [vmem:[#allocation3 + $0x18] sm:$0xff] %v1088
    %1236 = vst [vmem:[#allocation3 + $0x20] sm:$0xff] %v1157
    %1237 = vst [vmem:[#allocation3 + $0x28] sm:$0xff] %v1159
    %1238 = vst [vmem:[#allocation3 + $0x30] sm:$0xff] %v1228
    %1239 = vst [vmem:[#allocation3 + $0x38] sm:$0xff] %v1230
    // Predicated region
    $region68: #{mlp_forward.1} parent=1 // pred_check
      _
    $region69: #{mlp_forward.1} parent=1 // pred_check_branch
      %1241 = sbr.rel (0) target = $region71
    $region70: #{mlp_forward.1} parent=1 // pred_region
      // Predicated region
      $region72: #{mlp_forward.1} parent=70 // pred_check
        _
      $region73: #{mlp_forward.1} parent=70 // pred_check_branch
        %1243 = sbr.rel (0) target = $region75
      $region74: #{mlp_forward.1} parent=70 // pred_region
        // Predicated region
        $region76: #{mlp_forward.1} parent=74 // pred_check
          _
        $region77: #{mlp_forward.1} parent=74 // pred_check_branch
          %1245 = sbr.rel (0) target = $region79
        $region78: #{mlp_forward.1} parent=74 // pred_region
          // Predicated region
          $region91: #{mlp_forward.1} parent=78 // pred_check
            _
          $region92: #{mlp_forward.1} parent=78 // pred_check_branch
            %1260 = sbr.rel (0) target = $region94
          $region93: #{mlp_forward.1} parent=78 // pred_region
            loop: start=0, step=1, limit=1
            $region95: #{mlp_forward.1} parent=93 // loop_pre_header
              _
            $region96: #{mlp_forward.1} parent=93 // loop_header
              %s1262 = sphi 0, %s1266
              %p1263 = scmp.ge.s32.totalorder %s1262, 1
              %s1267 = sphi [#allocation3], [#allocation3]
              %s1268 = sphi %s7, %s7
            $region97: #{mlp_forward.1} parent=93 // loop_header_branch
              %1265 = sbr.rel (%p1263) target = $region101
            $region98: #{mlp_forward.1} parent=93 // loop_body
              %v1269 = vld [vmem:[%s1267] sm:$0xff]
              %1270 = vst [vmem:[%s1268] sm:$0xff] %v1269
            $region99: #{mlp_forward.1} parent=93 // loop_footer
              %s1266 = sadd.s32 1, %s1262
            $region100: #{mlp_forward.1} parent=93 // loop_footer_branch
              %1261 = sbr.rel target = $region96
            $region101: #{mlp_forward.1} parent=93 // loop_exit
              _
          $region94: #{mlp_forward.1} parent=78 // pred_fallthru
            _
          // Predicated region
          $region102: #{mlp_forward.1} parent=78 // pred_check
            _
          $region103: #{mlp_forward.1} parent=78 // pred_check_branch
            %1272 = sbr.rel target = $region105
          $region104: #{mlp_forward.1} parent=78 // pred_region
            _
          $region105: #{mlp_forward.1} parent=78 // pred_fallthru
            _
        $region79: #{mlp_forward.1} parent=74 // pred_fallthru
          _
        // Predicated region
        $region80: #{mlp_forward.1} parent=74 // pred_check
          _
        $region81: #{mlp_forward.1} parent=74 // pred_check_branch
          %1247 = sbr.rel target = $region83
        $region82: #{mlp_forward.1} parent=74 // pred_region
          loop: start=0, step=1, limit=1
          $region84: #{mlp_forward.1} parent=82 // loop_pre_header
            _
          $region85: #{mlp_forward.1} parent=82 // loop_header
            %s1250 = sphi 0, %s1254
            %p1251 = scmp.ge.s32.totalorder %s1250, 1
            %s1255 = sphi [#allocation3], [#allocation3]
            %s1256 = sphi %s7, %s7
          $region86: #{mlp_forward.1} parent=82 // loop_header_branch
            %1253 = sbr.rel (%p1251) target = $region90
          $region87: #{mlp_forward.1} parent=82 // loop_body
            %v1257 = vld [vmem:[%s1255] sm:$0xff]
            %1258 = vst [vmem:[%s1256] sm:$0xff] %v1257
          $region88: #{mlp_forward.1} parent=82 // loop_footer
            %s1254 = sadd.s32 1, %s1250
          $region89: #{mlp_forward.1} parent=82 // loop_footer_branch
            %1249 = sbr.rel target = $region85
          $region90: #{mlp_forward.1} parent=82 // loop_exit
            _
        $region83: #{mlp_forward.1} parent=74 // pred_fallthru
          _
      $region75: #{mlp_forward.1} parent=70 // pred_fallthru
        _
      %1273 = vnop
    $region71: #{mlp_forward.1} parent=1 // pred_fallthru
      _
    // Predicated region
    $region106: #{mlp_forward.1} parent=1 // pred_check
      _
    $region107: #{mlp_forward.1} parent=1 // pred_check_branch
      %1275 = sbr.rel (0) target = $region109
    $region108: #{mlp_forward.1} parent=1 // pred_region
      _
    $region109: #{mlp_forward.1} parent=1 // pred_fallthru
      _

</llo_original>
